<compile_context>
chip_gen: v7x
topology: tpu7x:2x2x1
jax: 0.10.0
libtpu: 0.0.40
codegen_flags: <defaults>
</compile_context>

<pallas_src>
import functools

import jax
import jax.numpy as jnp
from jax.experimental import pallas as pl
from jax.experimental.pallas import tpu as pltpu


def _round_up(n, m):
    return ((n + m - 1) // m) * m


# ----------------------------- Pallas kernel --------------------------------
def _conv_block_kernel(x_ref, h_ref, w_ref, b_ref, o_ref, xw, xk,
                       *, kh, kw, wp, cp, lt):
    """One (image, lane-tile) step: stacked-K conv matmul, fused bias + ReLU.

    x_ref: (1, Cp, LT)        bf16  current lane tile of the flattened image
    h_ref: (1, 1, Cp, Hm)     bf16  halo lanes following this tile
    w_ref: (OC, KH*KW*Cp)     bf16  stacked-tap weight matrix
    b_ref: (OC, 1)            f32   bias
    o_ref: (1, OC, LT)        bf16  output lane tile
    xw:    (Cp, LT+Hm)        bf16  scratch: tile + halo, contiguous lanes
    xk:    (KH*KW*Cp, LT)     bf16  scratch: stacked shifted windows
    """
    # Assemble [tile | halo] once; every tap below is a static lane slice of it.
    xw[:, :lt] = x_ref[0]
    xw[:, lt:] = h_ref[0, 0]

    # Stack the KH*KW lane-shifted windows along the contraction (sublane) axis.
    for t in range(kh * kw):
        s = (t // kw) * wp + (t % kw)          # static shift: ki*Wp + kj
        xk[t * cp:(t + 1) * cp, :] = xw[:, s:s + lt]

    # Single big-K matmul on the MXU, f32 accumulation.
    acc = jnp.dot(w_ref[...], xk[...], preferred_element_type=jnp.float32)
    acc = acc + b_ref[...]                      # bias broadcast (OC,1)->(OC,LT)
    o_ref[0, :, :] = jnp.maximum(acc, 0.0).astype(o_ref.dtype)   # ReLU, bf16


# ------------------------------ JAX glue -------------------------------------
def conv2d_block_forward(x, weight, bias, *, stride=1, padding=0,
                         lane_tile=512, compute_dtype=jnp.bfloat16):
    """Conv2dBlock forward: ZeroPad2d(padding) -> Conv2d(stride, bias) -> ReLU.

    x:      (B, C, H, W)    float32, NCHW
    weight: (OC, C, KH, KW) PyTorch conv weight layout
    bias:   (OC,)
    returns (B, OC, OH, OW) bf16 (downstream blocks consume bf16 on the MXU)
    """
    B, C, H, W = x.shape
    OC, _, KH, KW = weight.shape

    Hp, Wp = H + 2 * padding, W + 2 * padding
    OH = (Hp - KH) // stride + 1
    OW = (Wp - KW) // stride + 1
    OHf = Hp - KH + 1                 # stride-1 output rows on the padded grid

    # Flattened-pixel geometry: stride-1 conv on the full padded-width grid,
    # row stride Wp, so every kernel tap is one constant lane shift.
    l_out_full = OHf * Wp
    max_shift = (KH - 1) * Wp + (KW - 1)
    Hm = _round_up(max(max_shift, 1), 128)          # halo lanes per tile
    LT = max(Hm, min(_round_up(l_out_full, 128), _round_up(lane_tile, 128)))
    nt = pl.cdiv(l_out_full, LT)                    # lane tiles per image
    l_out = nt * LT
    l_in = (nt + 1) * LT                            # >= Hp*Wp and >= nt*LT+Hm
    Cp = _round_up(C, 16)                           # bf16 sublane packing

    # cast -> pad (bf16 pad copy, half the HBM traffic of padding in f32).
    x_b = x.astype(compute_dtype)
    x_pad = jnp.pad(x_b, ((0, 0), (0, Cp - C),
                          (padding, padding), (padding, padding)))
    x_flat = x_pad.reshape(B, Cp, Hp * Wp)
    x_flat = jnp.pad(x_flat, ((0, 0), (0, 0), (0, l_in - Hp * Wp)))

    # Per-tile halo: first Hm lanes of the *next* lane block.
    blocks = x_flat.reshape(B, Cp, nt + 1, LT)
    halo = jnp.transpose(blocks[:, :, 1:, :Hm], (0, 2, 1, 3))   # (B, nt, Cp, Hm)

    # (OC, C, KH, KW) -> (OC, KH*KW*Cp): stacked-tap weight matrix whose column
    # blocks [t*Cp:(t+1)*Cp] match the scratch layout built in the kernel.
    w_stack = jnp.transpose(weight, (0, 2, 3, 1))               # (OC, KH, KW, C)
    w_stack = jnp.pad(w_stack, ((0, 0), (0, 0), (0, 0), (0, Cp - C)))
    w_stack = w_stack.reshape(OC, KH * KW * Cp).astype(compute_dtype)
    b2d = bias.reshape(OC, 1).astype(jnp.float32)

    kernel = functools.partial(_conv_block_kernel, kh=KH, kw=KW, wp=Wp,
                               cp=Cp, lt=LT)

    # VMEM budget: double-buffered blocks + resident weights/bias + scratch.
    esz = jnp.dtype(compute_dtype).itemsize
    vmem_needed = (2 * (Cp * LT + Cp * Hm + OC * LT) * esz
                   + OC * KH * KW * Cp * esz + OC * 4
                   + (Cp * (LT + Hm) + KH * KW * Cp * LT) * esz)
    vmem_limit = int(max(32 * 1024 * 1024, 2 * vmem_needed))

    out_flat = pl.pallas_call(
        kernel,
        out_shape=jax.ShapeDtypeStruct((B, OC, l_out), compute_dtype),
        grid_spec=pltpu.PrefetchScalarGridSpec(
            num_scalar_prefetch=0,
            grid=(B, nt),
            in_specs=[
                pl.BlockSpec((1, Cp, LT), lambda b, r: (b, 0, r)),      # tile
                pl.BlockSpec((1, 1, Cp, Hm), lambda b, r: (b, r, 0, 0)),  # halo
                pl.BlockSpec((OC, KH * KW * Cp), lambda b, r: (0, 0)),  # weights
                pl.BlockSpec((OC, 1), lambda b, r: (0, 0)),             # bias
            ],
            out_specs=pl.BlockSpec((1, OC, LT), lambda b, r: (b, 0, r)),
            scratch_shapes=[
                pltpu.VMEM((Cp, LT + Hm), compute_dtype),
                pltpu.VMEM((KH * KW * Cp, LT), compute_dtype),
            ],
        ),
        compiler_params=pltpu.CompilerParams(
            dimension_semantics=("parallel", "parallel"),
            vmem_limit_bytes=vmem_limit),
    )(x_flat, halo, w_stack, b2d)

    # Un-flatten the stride-1 grid, then apply stride and crop the garbage
    # columns introduced by keeping the padded-width row stride.
    out = out_flat[:, :, :l_out_full].reshape(B, OC, OHf, Wp)
    out = out[:, :, ::stride, ::stride][:, :, :OH, :OW]
    return out


# ------------------------------- main ----------------------------------------
if __name__ == "__main__":
    # Conv2dBlock(input_dim=4, output_dim=8, kernel_size=3, stride=1, padding=1,
    #             norm='none', activation='relu', pad_type='zero')
    B, C, H, W = 2, 4, 16, 16
    OC, KH, KW = 8, 3, 3
    stride, padding = 1, 1

    key = jax.random.PRNGKey(0)
    kx, kw_, kb = jax.random.split(key, 3)

    x = jax.random.normal(kx, (B, C, H, W), dtype=jnp.float32)
    fan_in = C * KH * KW
    bound = 1.0 / (fan_in ** 0.5)
    weight = jax.random.uniform(kw_, (OC, C, KH, KW), jnp.float32, -bound, bound)
    bias = jax.random.uniform(kb, (OC,), jnp.float32, -bound, bound)

    # lane_tile=128 exercises the multi-tile (halo) path at this small size.
    out = conv2d_block_forward(x, weight, bias, stride=stride, padding=padding,
                               lane_tile=128)
    out = jax.block_until_ready(out)

    # Reference with matching numerics (bf16 MXU inputs, f32 accumulation).
    ref = jax.lax.conv_general_dilated(
        x.astype(jnp.bfloat16), weight.astype(jnp.bfloat16),
        window_strides=(stride, stride),
        padding=[(padding, padding), (padding, padding)],
        dimension_numbers=("NCHW", "OIHW", "NCHW"),
        preferred_element_type=jnp.float32)
    ref = jnp.maximum(ref + bias[None, :, None, None], 0.0)

    assert out.shape == (B, OC, H, W)
    assert jnp.allclose(out.astype(jnp.float32), ref, atol=3e-2, rtol=3e-2), \
        "mismatch vs reference"

    print("KERNEL_OK")
</pallas_src>

<mosaic_0001>
module attributes {stable_mosaic.version = 11 : i64} {
  func.func @_conv_block_kernel(%arg0: i32, %arg1: i32, %arg2: memref<1x16x128xbf16, #tpu.memory_space<vmem>>, %arg3: memref<1x1x16x128xbf16, #tpu.memory_space<vmem>>, %arg4: memref<8x144xbf16, #tpu.memory_space<vmem>>, %arg5: memref<8x1xf32, #tpu.memory_space<vmem>>, %arg6: memref<1x8x128xbf16, #tpu.memory_space<vmem>>, %arg7: memref<16x256xbf16, #tpu.memory_space<vmem>>, %arg8: memref<144x128xbf16, #tpu.memory_space<vmem>>) attributes {dimension_semantics = [#tpu.dimension_semantics<parallel>, #tpu.dimension_semantics<parallel>], iteration_bounds = array<i64: 2, 3>, scalar_prefetch = 0 : i64, scratch_operands = 2 : i64, tpu.core_type = #tpu.core_type<tc>, window_params = [{transform_indices = @transform_0, window_bounds = array<i64: 1, 16, 128>}, {transform_indices = @transform_1, window_bounds = array<i64: 1, 1, 16, 128>}, {pipeline_mode = #tpu.pipeline_mode<synchronous>, transform_indices = @transform_2, window_bounds = array<i64: 8, 144>}, {pipeline_mode = #tpu.pipeline_mode<synchronous>, transform_indices = @transform_3, window_bounds = array<i64: 8, 1>}, {transform_indices = @transform_4, window_bounds = array<i64: 1, 8, 128>}]} {
    %c0 = arith.constant 0 : index
    %c0_0 = arith.constant 0 : index
    %c0_1 = arith.constant 0 : index
    %0 = vector.load %arg2[%c0, %c0_0, %c0_1] : memref<1x16x128xbf16, #tpu.memory_space<vmem>>, vector<1x16x128xbf16>
    %1 = vector.shape_cast %0 : vector<1x16x128xbf16> to vector<16x128xbf16>
    %c0_2 = arith.constant 0 : index
    %c0_3 = arith.constant 0 : index
    %2 = vector.load %arg7[%c0_2, %c0_3] : memref<16x256xbf16, #tpu.memory_space<vmem>>, vector<16x128xbf16>
    tpu.vector_store %arg7[%c0_2, %c0_3], %1 {strides = array<i32>} : memref<16x256xbf16, #tpu.memory_space<vmem>>, vector<16x128xbf16>,
    %c0_4 = arith.constant 0 : index
    %c0_5 = arith.constant 0 : index
    %c0_6 = arith.constant 0 : index
    %c0_7 = arith.constant 0 : index
    %3 = vector.load %arg3[%c0_4, %c0_5, %c0_6, %c0_7] : memref<1x1x16x128xbf16, #tpu.memory_space<vmem>>, vector<1x1x16x128xbf16>
    %4 = vector.shape_cast %3 : vector<1x1x16x128xbf16> to vector<16x128xbf16>
    %c0_8 = arith.constant 0 : index
    %c128 = arith.constant 128 : index
    %5 = vector.load %arg7[%c0_8, %c128] : memref<16x256xbf16, #tpu.memory_space<vmem>>, vector<16x128xbf16>
    tpu.vector_store %arg7[%c0_8, %c128], %4 {strides = array<i32>} : memref<16x256xbf16, #tpu.memory_space<vmem>>, vector<16x128xbf16>,
    %c0_9 = arith.constant 0 : index
    %c0_10 = arith.constant 0 : index
    %6 = vector.load %arg7[%c0_9, %c0_10] : memref<16x256xbf16, #tpu.memory_space<vmem>>, vector<16x128xbf16>
    %c0_11 = arith.constant 0 : index
    %c0_12 = arith.constant 0 : index
    %7 = vector.load %arg8[%c0_11, %c0_12] : memref<144x128xbf16, #tpu.memory_space<vmem>>, vector<16x128xbf16>
    tpu.vector_store %arg8[%c0_11, %c0_12], %6 {strides = array<i32>} : memref<144x128xbf16, #tpu.memory_space<vmem>>, vector<16x128xbf16>,
    %c0_13 = arith.constant 0 : index
    %c1 = arith.constant 1 : index
    %8 = vector.load %arg7[%c0_13, %c1] : memref<16x256xbf16, #tpu.memory_space<vmem>>, vector<16x128xbf16>
    %c16 = arith.constant 16 : index
    %c0_14 = arith.constant 0 : index
    %9 = vector.load %arg8[%c16, %c0_14] : memref<144x128xbf16, #tpu.memory_space<vmem>>, vector<16x128xbf16>
    tpu.vector_store %arg8[%c16, %c0_14], %8 {strides = array<i32>} : memref<144x128xbf16, #tpu.memory_space<vmem>>, vector<16x128xbf16>,
    %c0_15 = arith.constant 0 : index
    %c2 = arith.constant 2 : index
    %10 = vector.load %arg7[%c0_15, %c2] : memref<16x256xbf16, #tpu.memory_space<vmem>>, vector<16x128xbf16>
    %c32 = arith.constant 32 : index
    %c0_16 = arith.constant 0 : index
    %11 = vector.load %arg8[%c32, %c0_16] : memref<144x128xbf16, #tpu.memory_space<vmem>>, vector<16x128xbf16>
    tpu.vector_store %arg8[%c32, %c0_16], %10 {strides = array<i32>} : memref<144x128xbf16, #tpu.memory_space<vmem>>, vector<16x128xbf16>,
    %c0_17 = arith.constant 0 : index
    %c18 = arith.constant 18 : index
    %12 = vector.load %arg7[%c0_17, %c18] : memref<16x256xbf16, #tpu.memory_space<vmem>>, vector<16x128xbf16>
    %c48 = arith.constant 48 : index
    %c0_18 = arith.constant 0 : index
    %13 = vector.load %arg8[%c48, %c0_18] : memref<144x128xbf16, #tpu.memory_space<vmem>>, vector<16x128xbf16>
    tpu.vector_store %arg8[%c48, %c0_18], %12 {strides = array<i32>} : memref<144x128xbf16, #tpu.memory_space<vmem>>, vector<16x128xbf16>,
    %c0_19 = arith.constant 0 : index
    %c19 = arith.constant 19 : index
    %14 = vector.load %arg7[%c0_19, %c19] : memref<16x256xbf16, #tpu.memory_space<vmem>>, vector<16x128xbf16>
    %c64 = arith.constant 64 : index
    %c0_20 = arith.constant 0 : index
    %15 = vector.load %arg8[%c64, %c0_20] : memref<144x128xbf16, #tpu.memory_space<vmem>>, vector<16x128xbf16>
    tpu.vector_store %arg8[%c64, %c0_20], %14 {strides = array<i32>} : memref<144x128xbf16, #tpu.memory_space<vmem>>, vector<16x128xbf16>,
    %c0_21 = arith.constant 0 : index
    %c20 = arith.constant 20 : index
    %16 = vector.load %arg7[%c0_21, %c20] : memref<16x256xbf16, #tpu.memory_space<vmem>>, vector<16x128xbf16>
    %c80 = arith.constant 80 : index
    %c0_22 = arith.constant 0 : index
    %17 = vector.load %arg8[%c80, %c0_22] : memref<144x128xbf16, #tpu.memory_space<vmem>>, vector<16x128xbf16>
    tpu.vector_store %arg8[%c80, %c0_22], %16 {strides = array<i32>} : memref<144x128xbf16, #tpu.memory_space<vmem>>, vector<16x128xbf16>,
    %c0_23 = arith.constant 0 : index
    %c36 = arith.constant 36 : index
    %18 = vector.load %arg7[%c0_23, %c36] : memref<16x256xbf16, #tpu.memory_space<vmem>>, vector<16x128xbf16>
    %c96 = arith.constant 96 : index
    %c0_24 = arith.constant 0 : index
    %19 = vector.load %arg8[%c96, %c0_24] : memref<144x128xbf16, #tpu.memory_space<vmem>>, vector<16x128xbf16>
    tpu.vector_store %arg8[%c96, %c0_24], %18 {strides = array<i32>} : memref<144x128xbf16, #tpu.memory_space<vmem>>, vector<16x128xbf16>,
    %c0_25 = arith.constant 0 : index
    %c37 = arith.constant 37 : index
    %20 = vector.load %arg7[%c0_25, %c37] : memref<16x256xbf16, #tpu.memory_space<vmem>>, vector<16x128xbf16>
    %c112 = arith.constant 112 : index
    %c0_26 = arith.constant 0 : index
    %21 = vector.load %arg8[%c112, %c0_26] : memref<144x128xbf16, #tpu.memory_space<vmem>>, vector<16x128xbf16>
    tpu.vector_store %arg8[%c112, %c0_26], %20 {strides = array<i32>} : memref<144x128xbf16, #tpu.memory_space<vmem>>, vector<16x128xbf16>,
    %c0_27 = arith.constant 0 : index
    %c38 = arith.constant 38 : index
    %22 = vector.load %arg7[%c0_27, %c38] : memref<16x256xbf16, #tpu.memory_space<vmem>>, vector<16x128xbf16>
    %c128_28 = arith.constant 128 : index
    %c0_29 = arith.constant 0 : index
    %23 = vector.load %arg8[%c128_28, %c0_29] : memref<144x128xbf16, #tpu.memory_space<vmem>>, vector<16x128xbf16>
    tpu.vector_store %arg8[%c128_28, %c0_29], %22 {strides = array<i32>} : memref<144x128xbf16, #tpu.memory_space<vmem>>, vector<16x128xbf16>,
    %c0_30 = arith.constant 0 : index
    %c0_31 = arith.constant 0 : index
    %24 = vector.load %arg4[%c0_30, %c0_31] : memref<8x144xbf16, #tpu.memory_space<vmem>>, vector<8x144xbf16>
    %c0_32 = arith.constant 0 : index
    %c0_33 = arith.constant 0 : index
    %25 = vector.load %arg8[%c0_32, %c0_33] : memref<144x128xbf16, #tpu.memory_space<vmem>>, vector<144x128xbf16>
    %cst = arith.constant dense<0.000000e+00> : vector<8x128xf32>
    %26 = tpu.matmul %24, %25, %cst {dimension_numbers = #tpu.dot_dimension_numbers<[1], [0], [0], [1], [0, 0, 1, 1], [], []>} : vector<8x144xbf16>, vector<144x128xbf16>, vector<8x128xf32> -> vector<8x128xf32>
    %c0_34 = arith.constant 0 : index
    %c0_35 = arith.constant 0 : index
    %27 = vector.load %arg5[%c0_34, %c0_35] : memref<8x1xf32, #tpu.memory_space<vmem>>, vector<8x1xf32>
    %28 = vector.broadcast %27 : vector<8x1xf32> to vector<8x128xf32>
    %29 = arith.addf %26, %28 : vector<8x128xf32>
    %cst_36 = arith.constant 0.000000e+00 : f32
    %30 = vector.broadcast %cst_36 : f32 to vector<8x128xf32>
    %31 = arith.maximumf %29, %30 : vector<8x128xf32>
    %32 = arith.truncf %31 : vector<8x128xf32> to vector<8x128xbf16>
    %c0_37 = arith.constant 0 : index
    %c0_38 = arith.constant 0 : index
    %c0_39 = arith.constant 0 : index
    %33 = vector.load %arg6[%c0_37, %c0_38, %c0_39] : memref<1x8x128xbf16, #tpu.memory_space<vmem>>, vector<1x8x128xbf16>
    %34 = vector.shape_cast %33 : vector<1x8x128xbf16> to vector<8x128xbf16>
    %35 = vector.shape_cast %32 : vector<8x128xbf16> to vector<1x8x128xbf16>
    tpu.vector_store %arg6[%c0_37, %c0_38, %c0_39], %35 {strides = array<i32>} : memref<1x8x128xbf16, #tpu.memory_space<vmem>>, vector<1x8x128xbf16>,
    return
  }
  func.func @transform_0(%arg0: i32, %arg1: i32) -> (i32, i32, i32) {
    %c0_i32 = arith.constant 0 : i32
    %c0_i32_0 = arith.constant 0 : i32
    return %arg0, %c0_i32, %arg1 : i32, i32, i32
  }
  func.func @transform_1(%arg0: i32, %arg1: i32) -> (i32, i32, i32, i32) {
    %c0_i32 = arith.constant 0 : i32
    %c0_i32_0 = arith.constant 0 : i32
    %c0_i32_1 = arith.constant 0 : i32
    return %arg0, %arg1, %c0_i32, %c0_i32_0 : i32, i32, i32, i32
  }
  func.func @transform_2(%arg0: i32, %arg1: i32) -> (i32, i32) {
    %c0_i32 = arith.constant 0 : i32
    %c0_i32_0 = arith.constant 0 : i32
    %c0_i32_1 = arith.constant 0 : i32
    return %c0_i32, %c0_i32_0 : i32, i32
  }
  func.func @transform_3(%arg0: i32, %arg1: i32) -> (i32, i32) {
    %c0_i32 = arith.constant 0 : i32
    %c0_i32_0 = arith.constant 0 : i32
    %c0_i32_1 = arith.constant 0 : i32
    return %c0_i32, %c0_i32_0 : i32, i32
  }
  func.func @transform_4(%arg0: i32, %arg1: i32) -> (i32, i32, i32) {
    %c0_i32 = arith.constant 0 : i32
    %c0_i32_0 = arith.constant 0 : i32
    return %arg0, %c0_i32, %arg1 : i32, i32, i32
  }
}

</mosaic_0001>

<llo_original>
// kernel: tpu_custom_call.1
$region0: #{tpu_custom_call.1}
  #allocation0 [shape = 'u32[]', space=smem, size = 0x4, offset = 0x4, fixed_abs, tag = 'smem constant byte address 0x4 - core index']
  #allocation1 [shape = 'u32[144,128]{1,0:T(1,128)}', space=vmem, size = 0x12000, scoped, tag = 'internal scratch']
  #allocation2 [shape = 'bf16[16,256]{1,0:T(16,128)(2,1)}', space=vmem, size = 0x2000, scoped, tag = 'scratch operand']
  #allocation3 [shape = 'bf16[144,128]{1,0:T(16,128)(2,1)}', space=vmem, size = 0x9000, scoped, tag = 'scratch operand']
  %s0 = inlined_call_operand.hbm [shape: bf16[2,16,512], index: 0, kind: input, shape index: {}]
  %s1 = inlined_call_operand.hbm [shape: bf16[2,3,16,128], index: 1, kind: input, shape index: {}]
  %s2 = inlined_call_operand.vmem [shape: bf16[8,144], index: 2, kind: input, shape index: {}]
  %s3 = inlined_call_operand.vmem [shape: f32[8,1], index: 3, kind: input, shape index: {}]
  %s4 = inlined_call_operand.hbm [shape: bf16[2,8,384], index: 4, kind: output, shape index: {}]
  %s5 = sld [smem:[#allocation0]]
  $region57: #{tpu_custom_call.1} parent=0
    _
  %s7 = ssub.s32 1, %s5
  %s8 = scalar_select 0, %s7, %s5
  $region1: #{tpu_custom_call.1} parent=0
    #allocation4 [shape = 'u8[8192]{0}', space=vmem, size = 0x2000, scoped, tag = 'input window, operand 0']
    #allocation5 [shape = 's32[2]{0}', space=sflag, size = 0x8, scoped, tag = 'scoped memory for tpu_custom_call.1']
    #allocation6 [shape = 's32[2]{0}', space=sflag, size = 0x8, scoped, tag = 'scoped memory for tpu_custom_call.1']
    #allocation7 [shape = 'u8[8192]{0}', space=vmem, size = 0x2000, scoped, tag = 'input window, operand 1']
    #allocation8 [shape = 's32[2]{0}', space=sflag, size = 0x8, scoped, tag = 'scoped memory for tpu_custom_call.1']
    #allocation9 [shape = 'u8[4096]{0}', space=vmem, size = 0x1000, scoped, tag = 'output window, operand 0']
    %9 = vsyncpa [#allocation5], 0
    %s10 = scalar_lea.sflag [#allocation5], 1
    %11 = vsyncpa %s10, 0
    %12 = vsyncpa [#allocation8], 0
    %s13 = scalar_lea.sflag [#allocation8], 1
    %14 = vsyncpa %s13, 0
    %15 = vsyncpa [#allocation6], 0
    %s16 = scalar_lea.sflag [#allocation6], 1
    %17 = vsyncpa %s16, 0
    loop: start=0, step=1, limit=8
    $region2: #{tpu_custom_call.1} parent=1 // loop_pre_header
      _
    $region3: #{tpu_custom_call.1} parent=1 // loop_header
      %s19 = sphi 0, %s23
      %p20 = scmp.ge.s32.totalorder %s19, 8
      %s26 = sphi 0, %s38
      %s27 = sphi 0, %s34
      %s28 = sphi 0, %s26
      %s29 = sphi 0, %s27
      %s30 = sphi 0, %s28
      %s31 = sphi 0, %s29
      %s43 = sphi 0, %s45
      %s46 = sphi 0, %s43
      %s47 = sphi 0, %s46
      %s63 = sphi 0, %s47
      %s71 = sphi 0, %s73
      %s74 = sphi 0, %s71
      %s75 = sphi 0, %s74
      %s91 = sphi 0, %s75
      %s95 = sphi 0, %s95
      %s97 = sphi 0, %s95
      %s98 = sphi 0, %s97
      %s112 = sphi 0, %s98
      %s116 = sphi 0, %s116
      %s118 = sphi 0, %s116
      %s119 = sphi 0, %s118
      %s133 = sphi 0, %s119
      %s141 = sphi 0, %s143
      %s144 = sphi 0, %s141
      %s145 = sphi 0, %s144
      %s161 = sphi 0, %s145
    $region4: #{tpu_custom_call.1} parent=1 // loop_header_branch
      %22 = sbr.rel (%p20) target = $region8
    $region5: #{tpu_custom_call.1} parent=1 // loop_body
      %s24 = ssub.s32 %s19, 1
      %s25 = ssub.s32 %s19, 2
      %s32 = sadd.s32 1, %s27
      %p33 = scmp.ge.s32.totalorder %s32, 3
      %s34 = scalar_select %p33, 0, %s32
      %s35 = sadd.s32 1, %s26
      %s36 = scalar_select %p33, %s35, %s26
      %p37 = scmp.ge.s32.totalorder %s36, 2
      %s38 = scalar_select %p37, 0, %s36
      %s39 = ssub.s32 %s26, %s38
      %s40 = ssub.s32 %s27, %s34
      %s41 = sor.u32 %s39, %s40
      %p42 = scmp.eq.s32.totalorder %s41, 0
      %s44 = sadd.s32 %s43, 1
      %s45 = scalar_select %p42, %s43, %s44
      %p48 = pneg %p42
      %p49 = scmp.eq.s32.totalorder %s19, 5
      %p50 = por %p48, %p49
      %p51 = scmp.ne.s32.totalorder %s43, %s46
      %p52 = scmp.eq.s32.totalorder %s19, 0
      %p53 = por %p51, %p52
      %p54 = scmp.ne.s32.totalorder %s43, %s46
      %p55 = scmp.eq.s32.totalorder %s24, 5
      %p56 = por %p54, %p55
      %p57 = scmp.ne.s32.totalorder %s46, %s47
      %p58 = scmp.eq.s32.totalorder %s24, 0
      %p59 = por %p57, %p58
      %p60 = scmp.ne.s32.totalorder %s46, %s47
      %p61 = scmp.eq.s32.totalorder %s25, 5
      %p62 = por %p60, %p61
      %p64 = scmp.ne.s32.totalorder %s47, %s63
      %p65 = scmp.eq.s32.totalorder %s25, 0
      %p66 = por %p64, %p65
      %s67 = ssub.s32 %s26, %s38
      %s68 = ssub.s32 %s27, %s34
      %s69 = sor.u32 %s67, %s68
      %p70 = scmp.eq.s32.totalorder %s69, 0
      %s72 = sadd.s32 %s71, 1
      %s73 = scalar_select %p70, %s71, %s72
      %p76 = pneg %p70
      %p77 = scmp.eq.s32.totalorder %s19, 5
      %p78 = por %p76, %p77
      %p79 = scmp.ne.s32.totalorder %s71, %s74
      %p80 = scmp.eq.s32.totalorder %s19, 0
      %p81 = por %p79, %p80
      %p82 = scmp.ne.s32.totalorder %s71, %s74
      %p83 = scmp.eq.s32.totalorder %s24, 5
      %p84 = por %p82, %p83
      %p85 = scmp.ne.s32.totalorder %s74, %s75
      %p86 = scmp.eq.s32.totalorder %s24, 0
      %p87 = por %p85, %p86
      %p88 = scmp.ne.s32.totalorder %s74, %s75
      %p89 = scmp.eq.s32.totalorder %s25, 5
      %p90 = por %p88, %p89
      %p92 = scmp.ne.s32.totalorder %s75, %s91
      %p93 = scmp.eq.s32.totalorder %s25, 0
      %p94 = por %p92, %p93
      %s96 = sadd.s32 %s95, 1
      %p99 = scmp.eq.s32.totalorder %s19, 5
      %p100 = scmp.ne.s32.totalorder %s95, %s97
      %p101 = scmp.eq.s32.totalorder %s19, 0
      %p102 = por %p100, %p101
      %p103 = scmp.ne.s32.totalorder %s95, %s97
      %p104 = scmp.eq.s32.totalorder %s24, 5
      %p105 = por %p103, %p104
      %p106 = scmp.ne.s32.totalorder %s97, %s98
      %p107 = scmp.eq.s32.totalorder %s24, 0
      %p108 = por %p106, %p107
      %p109 = scmp.ne.s32.totalorder %s97, %s98
      %p110 = scmp.eq.s32.totalorder %s25, 5
      %p111 = por %p109, %p110
      %p113 = scmp.ne.s32.totalorder %s98, %s112
      %p114 = scmp.eq.s32.totalorder %s25, 0
      %p115 = por %p113, %p114
      %s117 = sadd.s32 %s116, 1
      %p120 = scmp.eq.s32.totalorder %s19, 5
      %p121 = scmp.ne.s32.totalorder %s116, %s118
      %p122 = scmp.eq.s32.totalorder %s19, 0
      %p123 = por %p121, %p122
      %p124 = scmp.ne.s32.totalorder %s116, %s118
      %p125 = scmp.eq.s32.totalorder %s24, 5
      %p126 = por %p124, %p125
      %p127 = scmp.ne.s32.totalorder %s118, %s119
      %p128 = scmp.eq.s32.totalorder %s24, 0
      %p129 = por %p127, %p128
      %p130 = scmp.ne.s32.totalorder %s118, %s119
      %p131 = scmp.eq.s32.totalorder %s25, 5
      %p132 = por %p130, %p131
      %p134 = scmp.ne.s32.totalorder %s119, %s133
      %p135 = scmp.eq.s32.totalorder %s25, 0
      %p136 = por %p134, %p135
      %s137 = ssub.s32 %s26, %s38
      %s138 = ssub.s32 %s27, %s34
      %s139 = sor.u32 %s137, %s138
      %p140 = scmp.eq.s32.totalorder %s139, 0
      %s142 = sadd.s32 %s141, 1
      %s143 = scalar_select %p140, %s141, %s142
      %p146 = pneg %p140
      %p147 = scmp.eq.s32.totalorder %s19, 5
      %p148 = por %p146, %p147
      %p149 = scmp.ne.s32.totalorder %s141, %s144
      %p150 = scmp.eq.s32.totalorder %s19, 0
      %p151 = por %p149, %p150
      %p152 = scmp.ne.s32.totalorder %s141, %s144
      %p153 = scmp.eq.s32.totalorder %s24, 5
      %p154 = por %p152, %p153
      %p155 = scmp.ne.s32.totalorder %s144, %s145
      %p156 = scmp.eq.s32.totalorder %s24, 0
      %p157 = por %p155, %p156
      %p158 = scmp.ne.s32.totalorder %s144, %s145
      %p159 = scmp.eq.s32.totalorder %s25, 5
      %p160 = por %p158, %p159
      %p162 = scmp.ne.s32.totalorder %s145, %s161
      %p163 = scmp.eq.s32.totalorder %s25, 0
      %p164 = por %p162, %p163
      %p165 = scmp.le.s32.totalorder 1, %s19
      %p166 = scmp.lt.s32.totalorder %s19, 7
      %p167 = pnand %p165, %p166
      %p168 = pneg %p167
      // Predicated region
      $region9: #{tpu_custom_call.1} parent=5 // pred_check
        _
      $region10: #{tpu_custom_call.1} parent=5 // pred_check_branch
        %170 = sbr.rel (%p167) target = $region12
      $region11: #{tpu_custom_call.1} parent=5 // pred_region
        %s171 = ssub.s32 %s19, 1
        // Predicated region
        $region13: #{tpu_custom_call.1} parent=11 // pred_check
          %p172 = pneg %p108
        $region14: #{tpu_custom_call.1} parent=11 // pred_check_branch
          %174 = sbr.rel (%p172) target = $region16
        $region15: #{tpu_custom_call.1} parent=11 // pred_region
          _
        $region16: #{tpu_custom_call.1} parent=11 // pred_fallthru
          _
        // Predicated region
        $region17: #{tpu_custom_call.1} parent=11 // pred_check
          %p175 = pneg %p129
        $region18: #{tpu_custom_call.1} parent=11 // pred_check_branch
          %177 = sbr.rel (%p175) target = $region20
        $region19: #{tpu_custom_call.1} parent=11 // pred_region
          _
        $region20: #{tpu_custom_call.1} parent=11 // pred_fallthru
          _
      $region12: #{tpu_custom_call.1} parent=5 // pred_fallthru
        _
      %p178 = scmp.lt.s32.totalorder %s19, 6
      // Predicated region
      $region21: #{tpu_custom_call.1} parent=5 // pred_check
        %p179 = pneg %p178
      $region22: #{tpu_custom_call.1} parent=5 // pred_check_branch
        %181 = sbr.rel (%p179) target = $region24
      $region23: #{tpu_custom_call.1} parent=5 // pred_region
        // Predicated region
        $region25: #{tpu_custom_call.1} parent=23 // pred_check
          %p182 = pneg %p53
        $region26: #{tpu_custom_call.1} parent=23 // pred_check_branch
          %184 = sbr.rel (%p182) target = $region28
        $region27: #{tpu_custom_call.1} parent=23 // pred_region
          %s185 = sand.u32 %s43, 1
          %s186 = scalar_lea.sflag [#allocation5], %s185
          %s187 = sand.u32 %s43, 1
          %s188 = smul.addr %s187, 8
          %s189 = scalar_lea.vmem [#allocation4], %s188
          %s191 = ssub.s32 128, 128
          %192 = vsyncadd %s186, %s191
          %s193 = smul.addr %s26, 8
          %s194 = sadd.s32 %s27, %s193
          %s195 = smul.addr %s194, 64
          %s196 = scalar_lea.hbm %s0, %s195
          %s197 = sshll.u32 %s189, 4
          %s198 = int_to_ptr.vmem [resolvable:$true] %s197
          %203 = dma.hbm_to_vmem [thread:$0]  %s196, 128, %s198, %s186, 256, 64, 4
        $region28: #{tpu_custom_call.1} parent=23 // pred_fallthru
          _
        // Predicated region
        $region29: #{tpu_custom_call.1} parent=23 // pred_check
          %p204 = pneg %p81
        $region30: #{tpu_custom_call.1} parent=23 // pred_check_branch
          %206 = sbr.rel (%p204) target = $region32
        $region31: #{tpu_custom_call.1} parent=23 // pred_region
          %s207 = sand.u32 %s71, 1
          %s208 = scalar_lea.sflag [#allocation8], %s207
          %s209 = sand.u32 %s71, 1
          %s210 = smul.addr %s209, 8
          %s211 = scalar_lea.vmem [#allocation7], %s210
          %s213 = ssub.s32 128, 128
          %214 = vsyncadd %s208, %s213
          %s215 = smul.addr %s27, 2
          %s216 = smul.addr %s26, 6
          %s217 = sadd.s32 %s215, %s216
          %s218 = smul.addr %s217, 64
          %s219 = scalar_lea.hbm %s1, %s218
          %s220 = sshll.u32 %s211, 4
          %s221 = int_to_ptr.vmem [resolvable:$true] %s220
          %226 = dma.hbm_to_vmem [thread:$0]  %s219, 128, %s221, %s208, 64, 64, 4
        $region32: #{tpu_custom_call.1} parent=23 // pred_fallthru
          _
      $region24: #{tpu_custom_call.1} parent=5 // pred_fallthru
        _
      %p227 = scmp.le.s32.totalorder 1, %s19
      %p228 = scmp.lt.s32.totalorder %s19, 7
      %p229 = pnand %p227, %p228
      %p230 = pneg %p229
      // Predicated region
      $region33: #{tpu_custom_call.1} parent=5 // pred_check
        _
      $region34: #{tpu_custom_call.1} parent=5 // pred_check_branch
        %232 = sbr.rel (%p229) target = $region36
      $region35: #{tpu_custom_call.1} parent=5 // pred_region
        %s233 = ssub.s32 %s19, 1
        %s234 = sand.u32 %s46, 1
        %s235 = scalar_lea.sflag [#allocation5], %s234
        %s236 = sand.u32 %s46, 1
        %s237 = smul.addr %s236, 8
        %s238 = scalar_lea.vmem [#allocation4], %s237
        // Predicated region
        $region37: #{tpu_custom_call.1} parent=35 // pred_check
          %p239 = pneg %p59
        $region38: #{tpu_custom_call.1} parent=35 // pred_check_branch
          %241 = sbr.rel (%p239) target = $region40
        $region39: #{tpu_custom_call.1} parent=35 // pred_region
          %242 = dma.done %s235, 128
        $region40: #{tpu_custom_call.1} parent=35 // pred_fallthru
          _
        %s243 = sand.u32 %s74, 1
        %s244 = scalar_lea.sflag [#allocation8], %s243
        %s245 = sand.u32 %s74, 1
        %s246 = smul.addr %s245, 8
        %s247 = scalar_lea.vmem [#allocation7], %s246
        // Predicated region
        $region41: #{tpu_custom_call.1} parent=35 // pred_check
          %p248 = pneg %p87
        $region42: #{tpu_custom_call.1} parent=35 // pred_check_branch
          %250 = sbr.rel (%p248) target = $region44
        $region43: #{tpu_custom_call.1} parent=35 // pred_region
          %251 = dma.done %s244, 128
        $region44: #{tpu_custom_call.1} parent=35 // pred_fallthru
          _
        %s252 = sand.u32 %s46, 1
        %s253 = scalar_lea.sflag [#allocation5], %s252
        %s254 = sand.u32 %s46, 1
        %s255 = smul.addr %s254, 8
        %s256 = scalar_lea.vmem [#allocation4], %s255
        %p257 = pneg %p59
        %p258 = pneg %p56
        %s259 = sand.u32 %s74, 1
        %s260 = scalar_lea.sflag [#allocation8], %s259
        %s261 = sand.u32 %s74, 1
        %s262 = smul.addr %s261, 8
        %s263 = scalar_lea.vmem [#allocation7], %s262
        %p264 = pneg %p87
        %p265 = pneg %p84
        %p266 = pneg %p108
        %p267 = pneg %p105
        %p268 = pneg %p129
        %p269 = pneg %p126
        %p270 = pneg %p157
        %p271 = pneg %p154
        %s272 = sand.u32 %s144, 1
        %s273 = scalar_lea.sflag [#allocation6], %s272
        %s274 = sand.u32 %s144, 1
        %s275 = smul.addr %s274, 4
        %s276 = scalar_lea.vmem [#allocation9], %s275
        %v278 = vld [vmem:[%s238] sm:$0xf]
        %v279 = vld [vmem:[%s238 + $0x4] sm:$0xf]
        %v282 = vunpack.c.l.b16 %v278
        %v283 = vunpack.c.l.b16 %v279
        %v284 = vpack.c.b16 %v283, %v282
        %286 = vst [vmem:[#allocation2] sm:$0xff] %v284
        %v287 = vld [vmem:[%s247] sm:$0xf]
        %v288 = vld [vmem:[%s247 + $0x4] sm:$0xf]
        %v291 = vunpack.c.l.b16 %v287
        %v292 = vunpack.c.l.b16 %v288
        %v293 = vpack.c.b16 %v292, %v291
        %295 = vst [vmem:[#allocation2 + $0x8] sm:$0xff] %v293
        %v296 = vld [vmem:[#allocation2] sm:$0xff]
        %297 = vst [vmem:[#allocation3] sm:$0xff] %v296
        %v298 = vld [vmem:[#allocation2] sm:$0xff]
        %v299 = vld [vmem:[#allocation2 + $0x8] sm:$0xff]
        %302 = vrot.lane.b32.xlu0 %v298, 127
        %v303 = vpop.permute.xlu0 %302
        %304 = vrot.lane.b32.xlu0 %v299, 127
        %v305 = vpop.permute.xlu0 %304
        %vm306 = vcmask 1039360
        %v307 = vsel %vm306, %v303, %v305
        %309 = vst [vmem:[#allocation3 + $0x8] sm:$0xff] %v307
        %v310 = vld [vmem:[#allocation2] sm:$0xff]
        %v311 = vld [vmem:[#allocation2 + $0x8] sm:$0xff]
        %314 = vrot.lane.b32.xlu0 %v310, 126
        %v315 = vpop.permute.xlu0 %314
        %316 = vrot.lane.b32.xlu0 %v311, 126
        %v317 = vpop.permute.xlu0 %316
        %vm318 = vcmask 1031168
        %v319 = vsel %vm318, %v315, %v317
        %321 = vst [vmem:[#allocation3 + $0x10] sm:$0xff] %v319
        %v322 = vld [vmem:[#allocation2] sm:$0xff]
        %v323 = vld [vmem:[#allocation2 + $0x8] sm:$0xff]
        %326 = vrot.lane.b32.xlu0 %v322, 110
        %v327 = vpop.permute.xlu0 %326
        %328 = vrot.lane.b32.xlu0 %v323, 110
        %v329 = vpop.permute.xlu0 %328
        %vm330 = vcmask 900096
        %v331 = vsel %vm330, %v327, %v329
        %333 = vst [vmem:[#allocation3 + $0x18] sm:$0xff] %v331
        %v334 = vld [vmem:[#allocation2] sm:$0xff]
        %v335 = vld [vmem:[#allocation2 + $0x8] sm:$0xff]
        %338 = vrot.lane.b32.xlu0 %v334, 109
        %v339 = vpop.permute.xlu0 %338
        %340 = vrot.lane.b32.xlu0 %v335, 109
        %v341 = vpop.permute.xlu0 %340
        %vm342 = vcmask 891904
        %v343 = vsel %vm342, %v339, %v341
        %345 = vst [vmem:[#allocation3 + $0x20] sm:$0xff] %v343
        %v346 = vld [vmem:[#allocation2] sm:$0xff]
        %v347 = vld [vmem:[#allocation2 + $0x8] sm:$0xff]
        %350 = vrot.lane.b32.xlu0 %v346, 108
        %v351 = vpop.permute.xlu0 %350
        %352 = vrot.lane.b32.xlu0 %v347, 108
        %v353 = vpop.permute.xlu0 %352
        %vm354 = vcmask 883712
        %v355 = vsel %vm354, %v351, %v353
        %357 = vst [vmem:[#allocation3 + $0x28] sm:$0xff] %v355
        %v358 = vld [vmem:[#allocation2] sm:$0xff]
        %v359 = vld [vmem:[#allocation2 + $0x8] sm:$0xff]
        %362 = vrot.lane.b32.xlu0 %v358, 92
        %v363 = vpop.permute.xlu0 %362
        %364 = vrot.lane.b32.xlu0 %v359, 92
        %v365 = vpop.permute.xlu0 %364
        %vm366 = vcmask 752640
        %v367 = vsel %vm366, %v363, %v365
        %369 = vst [vmem:[#allocation3 + $0x30] sm:$0xff] %v367
        %v370 = vld [vmem:[#allocation2] sm:$0xff]
        %v371 = vld [vmem:[#allocation2 + $0x8] sm:$0xff]
        %374 = vrot.lane.b32.xlu0 %v370, 91
        %v375 = vpop.permute.xlu0 %374
        %376 = vrot.lane.b32.xlu0 %v371, 91
        %v377 = vpop.permute.xlu0 %376
        %vm378 = vcmask 744448
        %v379 = vsel %vm378, %v375, %v377
        %381 = vst [vmem:[#allocation3 + $0x38] sm:$0xff] %v379
        %v382 = vld [vmem:[#allocation2] sm:$0xff]
        %v383 = vld [vmem:[#allocation2 + $0x8] sm:$0xff]
        %386 = vrot.lane.b32.xlu0 %v382, 90
        %v387 = vpop.permute.xlu0 %386
        %388 = vrot.lane.b32.xlu0 %v383, 90
        %v389 = vpop.permute.xlu0 %388
        %vm390 = vcmask 736256
        %v391 = vsel %vm390, %v387, %v389
        %393 = vst [vmem:[#allocation3 + $0x40] sm:$0xff] %v391
        %v394 = vld [vmem:[%s2] sm:$0xff]
        %v395 = vld [vmem:[#allocation3] sm:$0xff]
        %v396 = vld [vmem:[#allocation3 + $0x8] sm:$0xff]
        %v397 = vld [vmem:[#allocation3 + $0x10] sm:$0xff]
        %v398 = vld [vmem:[#allocation3 + $0x18] sm:$0xff]
        %v399 = vld [vmem:[#allocation3 + $0x20] sm:$0xff]
        %v400 = vld [vmem:[#allocation3 + $0x28] sm:$0xff]
        %v401 = vld [vmem:[#allocation3 + $0x30] sm:$0xff]
        %v402 = vld [vmem:[#allocation3 + $0x38] sm:$0xff]
        %v403 = vld [vmem:[#allocation3 + $0x40] sm:$0xff]
        %v404 = vld [vmem:[%s3] sm:$0xff]
        %406 = vset.pattern.permute.xlu0 0
        %407 = vperm.xlu0 %406, %v404
        %v408 = vpop.permute.xlu0 %407
        %v411 = vunpack.c.l.b16 %v394
        %v412 = vunpack.c.h.b16 %v394
        %v413 = vpack.c.b16 %v411, %v411
        %v414 = vpack.c.b16 %v412, %v412
        %vm416 = vcmask 130048
        %v418 = vsel %vm416, %v414, 0
        %420 = vmatprep.subr.bf16.mxu0 0
        %421 = vmatpush1.bf16.msra.mxu0 %v395
        %422 = vmatprep.subr.bf16.mxu0 0
        %423 = vmatpush1.bf16.msra.mxu0 %v396
        %424 = vmatprep.subr.bf16.mxu0 0
        %425 = vmatpush1.bf16.msra.mxu0 %v397
        %426 = vmatprep.subr.bf16.mxu0 0
        %427 = vmatpush1.bf16.msra.mxu0 %v398
        %428 = vmatprep.subr.bf16.mxu0 0
        %429 = vmatpush1.bf16.msra.mxu0 %v399
        %430 = vmatprep.subr.bf16.mxu0 0
        %431 = vmatpush1.bf16.msra.mxu0 %v400
        %432 = vmatprep.subr.bf16.mxu0 0
        %433 = vmatpush1.bf16.msra.mxu0 %v401
        %434 = vmatprep.subr.bf16.mxu0 0
        %435 = vmatpush1.bf16.msra.mxu0 %v402
        %436 = vmatprep.subr.bf16.mxu0 0
        %437 = vmatpush1.bf16.msra.mxu0 %v403
        %438 = vmatprep.subr.bf16.mxu0 0
        %439 = vmatpush1.bf16.msra.mxu0 0
        %440 = vmatprep.subr.bf16.mxu0 0
        %441 = vmatpush1.bf16.msra.mxu0 0
        %442 = vmatprep.subr.bf16.mxu0 0
        %443 = vmatpush1.bf16.msra.mxu0 0
        %444 = vmatprep.subr.bf16.mxu0 0
        %445 = vmatpush1.bf16.msra.mxu0 0
        %446 = vmatprep.subr.bf16.mxu0 0
        %447 = vmatpush1.bf16.msra.mxu0 0
        %448 = vmatprep.subr.bf16.mxu0 0
        %449 = vmatpush1.bf16.msra.mxu0 0
        %450 = vmatprep.subr.bf16.mxu0 0
        %451 = vmatpush1.bf16.msra.mxu0 0
        %452 = vmatprep.mubr.bf16.mxu0 %v418
        %453 = vmatmul.mubr.bf16.gmra.mrb[0].mxu0 %v413
        %v454 = vpop.f32.mrb[0].mxu0
        %v455 = vadd.f32 %v408, %v454
        %v456 = vpop.f32.mrb[0].mxu0
        %v457 = vpop.f32.mrb[0].mxu0
        %v458 = vpop.f32.mrb[0].mxu0
        %459 = vdwg.mxu0
        %v460 = vmax.f32 %v455, 0.0
        %v461 = vpack.c.bf16 %v460, %v460
        %462 = vst [vmem:[%s276] sm:$0xf] %v461
        %s463 = sand.u32 %s144, 1
        %s464 = scalar_lea.sflag [#allocation6], %s463
        %s465 = sand.u32 %s144, 1
        %s466 = smul.addr %s465, 4
        %s467 = scalar_lea.vmem [#allocation9], %s466
        // Predicated region
        $region45: #{tpu_custom_call.1} parent=35 // pred_check
          %p468 = pneg %p154
        $region46: #{tpu_custom_call.1} parent=35 // pred_check_branch
          %470 = sbr.rel (%p468) target = $region48
        $region47: #{tpu_custom_call.1} parent=35 // pred_region
          %s472 = ssub.s32 64, 64
          %473 = vsyncadd %s464, %s472
          %s474 = smul.addr %s28, 3
          %s475 = sadd.s32 %s29, %s474
          %s476 = smul.addr %s475, 64
          %s477 = scalar_lea.hbm %s4, %s476
          %s479 = sshll.u32 %s467, 4
          %s480 = int_to_ptr.vmem [resolvable:$true] %s479
          %482 = dma.vmem_to_hbm [thread:$0]  %s480, 64, %s477, %s464
        $region48: #{tpu_custom_call.1} parent=35 // pred_fallthru
          _
      $region36: #{tpu_custom_call.1} parent=5 // pred_fallthru
        _
      %p483 = scmp.le.s32.totalorder 2, %s19
      // Predicated region
      $region49: #{tpu_custom_call.1} parent=5 // pred_check
        %p484 = pneg %p483
      $region50: #{tpu_custom_call.1} parent=5 // pred_check_branch
        %486 = sbr.rel (%p484) target = $region52
      $region51: #{tpu_custom_call.1} parent=5 // pred_region
        %s487 = ssub.s32 %s19, 2
        // Predicated region
        $region53: #{tpu_custom_call.1} parent=51 // pred_check
          %p488 = pneg %p160
        $region54: #{tpu_custom_call.1} parent=51 // pred_check_branch
          %490 = sbr.rel (%p488) target = $region56
        $region55: #{tpu_custom_call.1} parent=51 // pred_region
          %s491 = sand.u32 %s145, 1
          %s492 = scalar_lea.sflag [#allocation6], %s491
          %s493 = sand.u32 %s145, 1
          %s494 = smul.addr %s493, 4
          %s495 = scalar_lea.vmem [#allocation9], %s494
          %496 = dma.done %s492, 64
        $region56: #{tpu_custom_call.1} parent=51 // pred_fallthru
          _
      $region52: #{tpu_custom_call.1} parent=5 // pred_fallthru
        _
    $region6: #{tpu_custom_call.1} parent=1 // loop_footer
      %s23 = sadd.s32 1, %s19
    $region7: #{tpu_custom_call.1} parent=1 // loop_footer_branch
      %18 = sbr.rel target = $region3
    $region8: #{tpu_custom_call.1} parent=1 // loop_exit
      _
    %497 = vsyncpa [#allocation5], 1
    %s498 = scalar_lea.sflag [#allocation5], 1
    %499 = vsyncpa %s498, 1
    %500 = vsyncpa [#allocation8], 1
    %s501 = scalar_lea.sflag [#allocation8], 1
    %502 = vsyncpa %s501, 1
    %503 = vsyncpa [#allocation6], 1
    %s504 = scalar_lea.sflag [#allocation6], 1
    %505 = vsyncpa %s504, 1

</llo_original>
